<compile_context>
chip_gen: v7x
topology: tpu7x:2x2x1
jax: 0.10.0
libtpu: 0.0.40
codegen_flags: <defaults>
</compile_context>

<pallas_src>
import math
from functools import partial

import jax
import jax.numpy as jnp
from jax import lax
from jax.experimental import pallas as pl
from jax.experimental.pallas import tpu as pltpu


_VMEM_LIMIT_BYTES = 48 * 1024 * 1024  # explicit scoped-VMEM limit, safe on v5e/v6e/v7x


# ---------------------------------------------------------------------------
# Tiling helpers
# ---------------------------------------------------------------------------
def _sublane_align(dtype):
    """Packed sublane count per vreg row: f32 -> 8, bf16 -> 16, int8/fp8 -> 32."""
    return max(8, 32 // jnp.dtype(dtype).itemsize)


def _pick_tile(dim, target, align):
    """Largest tile <= target that divides `dim` and is a multiple of `align`.

    Falls back to the full dimension (always legal: block == full array dim,
    possibly with a padded layout for odd sizes).
    """
    if dim <= target:
        return dim
    cand = (target // align) * align
    while cand >= align:
        if dim % cand == 0:
            return cand
        cand -= align
    return dim


# ---------------------------------------------------------------------------
# Tiled linear kernels (y = x @ W (+ b)) with f32 accumulator over K blocks
# ---------------------------------------------------------------------------
def _linear_kernel(x_ref, w_ref, o_ref, acc_ref):
    @pl.when(pl.program_id(2) == 0)
    def _():
        acc_ref[...] = jnp.zeros_like(acc_ref)

    acc_ref[...] += jnp.dot(
        x_ref[...], w_ref[...], preferred_element_type=jnp.float32
    )

    @pl.when(pl.program_id(2) == pl.num_programs(2) - 1)
    def _():
        o_ref[...] = acc_ref[...].astype(o_ref.dtype)


def _linear_bias_kernel(x_ref, w_ref, b_ref, o_ref, acc_ref):
    @pl.when(pl.program_id(2) == 0)
    def _():
        acc_ref[...] = jnp.zeros_like(acc_ref)

    acc_ref[...] += jnp.dot(
        x_ref[...], w_ref[...], preferred_element_type=jnp.float32
    )

    @pl.when(pl.program_id(2) == pl.num_programs(2) - 1)
    def _():
        o_ref[...] = (acc_ref[...] + b_ref[...].astype(jnp.float32)).astype(o_ref.dtype)


def pallas_linear(x2d, w, b=None, *, tm_target=256, tn_target=512, tk_target=1024):
    """y = x2d @ w (+ b).  x2d: (M, K), w: (K, N), b: (N,) or None."""
    M, K = x2d.shape
    K2, N = w.shape
    assert K == K2

    tm = _pick_tile(M, tm_target, _sublane_align(x2d.dtype))  # sublane dim of x / out
    tn = _pick_tile(N, tn_target, 128)                        # lane dim of w / out
    tk = _pick_tile(K, tk_target, 128)                        # lane dim of x, sublane of w
    grid = (M // tm, N // tn, K // tk)

    x_spec = pl.BlockSpec((tm, tk), lambda i, j, k: (i, k))
    w_spec = pl.BlockSpec((tk, tn), lambda i, j, k: (k, j))
    o_spec = pl.BlockSpec((tm, tn), lambda i, j, k: (i, j))
    scratch = [pltpu.VMEM((tm, tn), jnp.float32)]
    cparams = pltpu.CompilerParams(
        dimension_semantics=("parallel", "parallel", "arbitrary"),
        vmem_limit_bytes=_VMEM_LIMIT_BYTES,
    )

    if b is None:
        return pl.pallas_call(
            _linear_kernel,
            out_shape=jax.ShapeDtypeStruct((M, N), x2d.dtype),
            grid_spec=pltpu.PrefetchScalarGridSpec(
                num_scalar_prefetch=0,
                grid=grid,
                in_specs=[x_spec, w_spec],
                out_specs=o_spec,
                scratch_shapes=scratch,
            ),
            compiler_params=cparams,
        )(x2d, w)

    b2d = b.reshape(1, N)
    b_spec = pl.BlockSpec((1, tn), lambda i, j, k: (0, j))
    return pl.pallas_call(
        _linear_bias_kernel,
        out_shape=jax.ShapeDtypeStruct((M, N), x2d.dtype),
        grid_spec=pltpu.PrefetchScalarGridSpec(
            num_scalar_prefetch=0,
            grid=grid,
            in_specs=[x_spec, w_spec, b_spec],
            out_specs=o_spec,
            scratch_shapes=scratch,
        ),
        compiler_params=cparams,
    )(x2d, w, b2d)


# ---------------------------------------------------------------------------
# Fused multi-head cross-attention kernel
#   * grid = (batch, query-tiles, kv-tiles); kv axis is the flash-style
#     online-softmax reduction ("arbitrary"), batch/query tiles are "parallel".
#   * q is read from (B, Nq, inner); k/v are read directly from the fused
#     (B, Nk, 2*inner) kv projection (no wrapper slices / transposes).
#   * scratch: m/l packed as (tq, heads); acc lane-dense as (tq, inner), so the
#     epilogue is a single full-width store to o_ref.
# ---------------------------------------------------------------------------
def _flash_attention_kernel(q_ref, kv_ref, o_ref, m_sc, l_sc, acc_sc, *,
                            heads, dim_head, scale):
    # q_ref:  (1, Tq, heads*dim_head)
    # kv_ref: (1, Tk, 2*heads*dim_head)   [k | v] packed along the feature axis
    # o_ref:  (1, Tq, heads*dim_head)
    # m_sc/l_sc: (Tq, heads) f32 ; acc_sc: (Tq, heads*dim_head) f32
    kb = pl.program_id(2)
    inner = heads * dim_head

    @pl.when(kb == 0)
    def _():
        m_sc[...] = jnp.full_like(m_sc, -jnp.inf)
        l_sc[...] = jnp.zeros_like(l_sc)
        acc_sc[...] = jnp.zeros_like(acc_sc)

    for h in range(heads):
        lo = h * dim_head
        hi = lo + dim_head
        # MXU operands stay in the input dtype; softmax scale folded into q.
        qh = q_ref[0, :, lo:hi] * scale                    # (Tq, D)
        kh = kv_ref[0, :, lo:hi]                           # (Tk, D)
        vh = kv_ref[0, :, inner + lo:inner + hi]           # (Tk, D)

        # (Tq, Tk) scores: contract over the head dim, no explicit K transpose.
        s = lax.dot_general(
            qh, kh,
            dimension_numbers=(((1,), (1,)), ((), ())),
            preferred_element_type=jnp.float32,
        )

        m_prev = m_sc[:, h:h + 1]                          # (Tq, 1)
        l_prev = l_sc[:, h:h + 1]                          # (Tq, 1)
        acc_prev = acc_sc[:, lo:hi]                        # (Tq, D)

        m_new = jnp.maximum(m_prev, jnp.max(s, axis=-1, keepdims=True))
        alpha = jnp.exp(m_prev - m_new)
        p = jnp.exp(s - m_new)                             # f32

        m_sc[:, h:h + 1] = m_new
        l_sc[:, h:h + 1] = alpha * l_prev + jnp.sum(p, axis=-1, keepdims=True)
        acc_sc[:, lo:hi] = alpha * acc_prev + jnp.dot(
            p.astype(kv_ref.dtype), vh, preferred_element_type=jnp.float32
        )

    @pl.when(kb == pl.num_programs(2) - 1)
    def _():
        # Normalize per head inside the VMEM scratch, then one lane-dense store.
        for h in range(heads):
            lo = h * dim_head
            hi = lo + dim_head
            inv_l = pl.reciprocal(l_sc[:, h:h + 1], approx=False)   # (Tq, 1)
            acc_sc[:, lo:hi] = acc_sc[:, lo:hi] * inv_l
        # dropout(p=0.0) on the attention weights is the identity -> elided.
        o_ref[0] = acc_sc[...].astype(o_ref.dtype)


def pallas_cross_attention(q, kv, *, heads, dim_head, scale,
                           q_block_target=256, kv_block_target=1024):
    """q: (B, Nq, inner), kv: (B, Nk, 2*inner) -> (B, Nq, inner)."""
    B, Nq, inner = q.shape
    _, Nk, two_inner = kv.shape
    assert inner == heads * dim_head and two_inner == 2 * inner

    sub = _sublane_align(q.dtype)
    tq = _pick_tile(Nq, q_block_target, sub)   # query-sequence tile (sublane dim)
    tk = _pick_tile(Nk, kv_block_target, sub)  # kv-sequence tile (sublane dim)
    grid = (B, Nq // tq, Nk // tk)

    kernel = partial(
        _flash_attention_kernel, heads=heads, dim_head=dim_head, scale=scale
    )
    return pl.pallas_call(
        kernel,
        out_shape=jax.ShapeDtypeStruct((B, Nq, inner), q.dtype),
        grid_spec=pltpu.PrefetchScalarGridSpec(
            num_scalar_prefetch=0,
            grid=grid,
            in_specs=[
                pl.BlockSpec((1, tq, inner), lambda b, qi, kb: (b, qi, 0)),
                pl.BlockSpec((1, tk, 2 * inner), lambda b, qi, kb: (b, kb, 0)),
            ],
            out_specs=pl.BlockSpec((1, tq, inner), lambda b, qi, kb: (b, qi, 0)),
            scratch_shapes=[
                pltpu.VMEM((tq, heads), jnp.float32),   # running max m (all heads)
                pltpu.VMEM((tq, heads), jnp.float32),   # running sum l (all heads)
                pltpu.VMEM((tq, inner), jnp.float32),   # lane-dense output accumulator
            ],
        ),
        compiler_params=pltpu.CompilerParams(
            dimension_semantics=("parallel", "parallel", "arbitrary"),
            vmem_limit_bytes=_VMEM_LIMIT_BYTES,
        ),
    )(q, kv)


# ---------------------------------------------------------------------------
# Module: parameters + forward
# ---------------------------------------------------------------------------
def init_cross_attention_params(key, query_dim, heads, dim_head, dtype=jnp.float32):
    """Deterministic init mirroring torch nn.Linear default (U(-1/sqrt(fan_in), +))."""
    inner_dim = heads * dim_head
    context_dim = query_dim
    k1, k2, k3, k4 = jax.random.split(key, 4)

    def uinit(k, fan_in, shape):
        bound = 1.0 / math.sqrt(fan_in)
        return jax.random.uniform(k, shape, dtype, minval=-bound, maxval=bound)

    return {
        # stored as (in_features, out_features)
        "w_q": uinit(k1, query_dim, (query_dim, inner_dim)),
        "w_kv": uinit(k2, context_dim, (context_dim, 2 * inner_dim)),
        "w_out": uinit(k3, inner_dim, (inner_dim, query_dim)),
        "b_out": uinit(k4, inner_dim, (query_dim,)),
    }


def cross_attention_forward(params, x, context, heads, dim_head):
    """x: (B, Nq, query_dim), context: (B, Nk, query_dim) -> (B, Nq, query_dim)."""
    B, Nq, Dq = x.shape
    _, Nk, Dc = context.shape
    inner_dim = heads * dim_head
    scale = dim_head ** (-0.5)

    # projections (tiled Pallas matmul kernels); reshapes are contiguous views.
    q = pallas_linear(x.reshape(B * Nq, Dq), params["w_q"]).reshape(B, Nq, inner_dim)
    kv = pallas_linear(context.reshape(B * Nk, Dc), params["w_kv"]).reshape(
        B, Nk, 2 * inner_dim
    )

    # Fused multi-head attention: head split/merge and the k/v split are done
    # inside the kernel (BlockSpec + static lane slices); output comes back
    # lane-dense as (B, Nq, inner_dim) with no transpose round-trips.
    o = pallas_cross_attention(
        q, kv, heads=heads, dim_head=dim_head, scale=scale
    )

    # output projection (tiled Pallas matmul + bias kernel)
    out = pallas_linear(o.reshape(B * Nq, inner_dim), params["w_out"], params["b_out"])
    return out.reshape(B, Nq, Dq)


# pure-JAX reference for correctness check
def cross_attention_reference(params, x, context, heads, dim_head):
    B, Nq, Dq = x.shape
    _, Nk, _ = context.shape
    inner_dim = heads * dim_head
    scale = dim_head ** (-0.5)
    q = x @ params["w_q"]
    kv = context @ params["w_kv"]
    k, v = kv[..., :inner_dim], kv[..., inner_dim:]

    def split(t, n):
        return t.reshape(B, n, heads, dim_head).transpose(0, 2, 1, 3)

    qh, kh, vh = split(q, Nq), split(k, Nk), split(v, Nk)
    sim = jnp.einsum("bhid,bhjd->bhij", qh, kh) * scale
    attn = jax.nn.softmax(sim, axis=-1)
    o = jnp.einsum("bhij,bhjd->bhid", attn, vh)
    o = o.transpose(0, 2, 1, 3).reshape(B, Nq, inner_dim)
    return o @ params["w_out"] + params["b_out"]


if __name__ == "__main__":
    B = 2          # batch
    Nq = 8         # query sequence length
    Nk = 8         # context sequence length
    query_dim = 32
    heads = 4
    dim_head = 8   # inner_dim = 32

    key = jax.random.PRNGKey(0)
    kp, kx, kc = jax.random.split(key, 3)
    params = init_cross_attention_params(kp, query_dim, heads, dim_head)
    x = jax.random.normal(kx, (B, Nq, query_dim), jnp.float32)
    context = jax.random.normal(kc, (B, Nk, query_dim), jnp.float32)

    out = cross_attention_forward(params, x, context, heads, dim_head)
    out = jax.block_until_ready(out)

    ref = cross_attention_reference(params, x, context, heads, dim_head)
    assert out.shape == (B, Nq, query_dim)
    # Exact reciprocal in the softmax normalization (approx=False), so only
    # accumulation-order differences remain.
    assert jnp.allclose(out, ref, atol=1e-4, rtol=1e-4), "mismatch vs reference"

    print("KERNEL_OK")
</pallas_src>

<mosaic_0001>
module attributes {stable_mosaic.version = 11 : i64} {
  func.func @_linear_kernel(%arg0: i32, %arg1: i32, %arg2: i32, %arg3: memref<16x32xf32, #tpu.memory_space<vmem>>, %arg4: memref<32x32xf32, #tpu.memory_space<vmem>>, %arg5: memref<16x32xf32, #tpu.memory_space<vmem>>, %arg6: memref<16x32xf32, #tpu.memory_space<vmem>>) attributes {dimension_semantics = [#tpu.dimension_semantics<parallel>, #tpu.dimension_semantics<parallel>, #tpu.dimension_semantics<arbitrary>], iteration_bounds = array<i64: 1, 1, 1>, scalar_prefetch = 0 : i64, scratch_operands = 1 : i64, tpu.core_type = #tpu.core_type<tc>, window_params = [{transform_indices = @transform_0, window_bounds = array<i64: 16, 32>}, {transform_indices = @transform_1, window_bounds = array<i64: 32, 32>}, {transform_indices = @transform_2, window_bounds = array<i64: 16, 32>}]} {
    %c0_i32 = arith.constant 0 : i32
    %0 = arith.cmpi eq, %arg2, %c0_i32 : i32
    %1 = arith.extui %0 : i1 to i32
    %c0_i32_0 = arith.constant 0 : i32
    %2 = arith.cmpi ne, %1, %c0_i32_0 : i32
    scf.if %2 {
      %cst_10 = arith.constant 0.000000e+00 : f32
      %12 = vector.broadcast %cst_10 : f32 to vector<16x32xf32>
      %c0_11 = arith.constant 0 : index
      %c0_12 = arith.constant 0 : index
      %13 = vector.load %arg6[%c0_11, %c0_12] : memref<16x32xf32, #tpu.memory_space<vmem>>, vector<16x32xf32>
      tpu.vector_store %arg6[%c0_11, %c0_12], %12 {strides = array<i32>} : memref<16x32xf32, #tpu.memory_space<vmem>>, vector<16x32xf32>,
    } else {
    }
    %c0 = arith.constant 0 : index
    %c0_1 = arith.constant 0 : index
    %3 = vector.load %arg6[%c0, %c0_1] : memref<16x32xf32, #tpu.memory_space<vmem>>, vector<16x32xf32>
    %c0_2 = arith.constant 0 : index
    %c0_3 = arith.constant 0 : index
    %4 = vector.load %arg3[%c0_2, %c0_3] : memref<16x32xf32, #tpu.memory_space<vmem>>, vector<16x32xf32>
    %c0_4 = arith.constant 0 : index
    %c0_5 = arith.constant 0 : index
    %5 = vector.load %arg4[%c0_4, %c0_5] : memref<32x32xf32, #tpu.memory_space<vmem>>, vector<32x32xf32>
    %cst = arith.constant dense<0.000000e+00> : vector<16x32xf32>
    %6 = tpu.matmul %4, %5, %cst {dimension_numbers = #tpu.dot_dimension_numbers<[1], [0], [0], [1], [0, 0, 1, 1], [], []>} : vector<16x32xf32>, vector<32x32xf32>, vector<16x32xf32> -> vector<16x32xf32>
    %7 = arith.addf %3, %6 : vector<16x32xf32>
    %c0_6 = arith.constant 0 : index
    %c0_7 = arith.constant 0 : index
    %8 = vector.load %arg6[%c0_6, %c0_7] : memref<16x32xf32, #tpu.memory_space<vmem>>, vector<16x32xf32>
    tpu.vector_store %arg6[%c0_6, %c0_7], %7 {strides = array<i32>} : memref<16x32xf32, #tpu.memory_space<vmem>>, vector<16x32xf32>,
    %c0_i32_8 = arith.constant 0 : i32
    %9 = arith.cmpi eq, %arg2, %c0_i32_8 : i32
    %10 = arith.extui %9 : i1 to i32
    %c0_i32_9 = arith.constant 0 : i32
    %11 = arith.cmpi ne, %10, %c0_i32_9 : i32
    scf.if %11 {
      %c0_10 = arith.constant 0 : index
      %c0_11 = arith.constant 0 : index
      %12 = vector.load %arg6[%c0_10, %c0_11] : memref<16x32xf32, #tpu.memory_space<vmem>>, vector<16x32xf32>
      %c0_12 = arith.constant 0 : index
      %c0_13 = arith.constant 0 : index
      %13 = vector.load %arg5[%c0_12, %c0_13] : memref<16x32xf32, #tpu.memory_space<vmem>>, vector<16x32xf32>
      tpu.vector_store %arg5[%c0_12, %c0_13], %12 {strides = array<i32>} : memref<16x32xf32, #tpu.memory_space<vmem>>, vector<16x32xf32>,
    } else {
    }
    return
  }
  func.func @transform_0(%arg0: i32, %arg1: i32, %arg2: i32) -> (i32, i32) {
    %c0_i32 = arith.constant 0 : i32
    return %arg0, %arg2 : i32, i32
  }
  func.func @transform_1(%arg0: i32, %arg1: i32, %arg2: i32) -> (i32, i32) {
    %c0_i32 = arith.constant 0 : i32
    return %arg2, %arg1 : i32, i32
  }
  func.func @transform_2(%arg0: i32, %arg1: i32, %arg2: i32) -> (i32, i32) {
    %c0_i32 = arith.constant 0 : i32
    return %arg0, %arg1 : i32, i32
  }
}

</mosaic_0001>

<llo_original>
// kernel: tpu_custom_call.1
$region0: #{tpu_custom_call.1}
  #allocation0 [shape = 'u32[]', space=smem, size = 0x4, offset = 0x4, fixed_abs, tag = 'smem constant byte address 0x4 - core index']
  #allocation1 [shape = 'u32[144,128]{1,0:T(1,128)}', space=vmem, size = 0x12000, scoped, tag = 'internal scratch']
  #allocation2 [shape = 'f32[16,32]{1,0:T(8,128)}', space=vmem, size = 0x2000, scoped, tag = 'scratch operand']
  %s0 = inlined_call_operand.hbm [shape: f32[16,32], index: 0, kind: input, shape index: {}]
  %s1 = inlined_call_operand.hbm [shape: f32[32,32], index: 1, kind: input, shape index: {}]
  %s2 = inlined_call_operand.hbm [shape: f32[16,32], index: 2, kind: output, shape index: {}]
  %s3 = sld [smem:[#allocation0]]
  $region34: #{tpu_custom_call.1} parent=0
    _
  %s5 = ssub.s32 1, %s3
  %s6 = scalar_select 0, %s5, %s3
  $region1: #{tpu_custom_call.1} parent=0
    #allocation3 [shape = 'u8[8192]{0}', space=vmem, size = 0x2000, scoped, tag = 'input window, operand 0, single buffered']
    #allocation4 [shape = 's32[1]{0}', space=sflag, size = 0x4, scoped, tag = 'scoped memory for tpu_custom_call.1']
    #allocation5 [shape = 's32[1]{0}', space=sflag, size = 0x4, scoped, tag = 'scoped memory for tpu_custom_call.1']
    #allocation6 [shape = 'u8[16384]{0}', space=vmem, size = 0x4000, scoped, tag = 'input window, operand 1, single buffered']
    #allocation7 [shape = 's32[1]{0}', space=sflag, size = 0x4, scoped, tag = 'scoped memory for tpu_custom_call.1']
    #allocation8 [shape = 'u8[8192]{0}', space=vmem, size = 0x2000, scoped, tag = 'output window, operand 0, single buffered']
    %7 = vsyncpa [#allocation4], 0
    %8 = vsyncpa [#allocation7], 0
    %9 = vsyncpa [#allocation5], 0
    // Predicated region
    $region2: #{tpu_custom_call.1} parent=1 // pred_check
      _
    $region3: #{tpu_custom_call.1} parent=1 // pred_check_branch
      %11 = sbr.rel (0) target = $region5
    $region4: #{tpu_custom_call.1} parent=1 // pred_region
      %s13 = ssub.s32 256, 256
      %14 = vsyncadd [#allocation4], %s13
      %s15 = sshll.u32 [#allocation3], 4
      %s16 = int_to_ptr.vmem [resolvable:$true] %s15
      %21 = dma.hbm_to_vmem [thread:$0]  %s0, 256, %s16, [#allocation4], 128, 128, 8
    $region5: #{tpu_custom_call.1} parent=1 // pred_fallthru
      _
    // Predicated region
    $region6: #{tpu_custom_call.1} parent=1 // pred_check
      _
    $region7: #{tpu_custom_call.1} parent=1 // pred_check_branch
      %23 = sbr.rel (0) target = $region9
    $region8: #{tpu_custom_call.1} parent=1 // pred_region
      %s25 = ssub.s32 512, 512
      %26 = vsyncadd [#allocation7], %s25
      %s27 = sshll.u32 [#allocation6], 4
      %s28 = int_to_ptr.vmem [resolvable:$true] %s27
      %33 = dma.hbm_to_vmem [thread:$0]  %s1, 512, %s28, [#allocation7], 128, 128, 8
    $region9: #{tpu_custom_call.1} parent=1 // pred_fallthru
      _
    // Predicated region
    $region10: #{tpu_custom_call.1} parent=1 // pred_check
      _
    $region11: #{tpu_custom_call.1} parent=1 // pred_check_branch
      %35 = sbr.rel (0) target = $region13
    $region12: #{tpu_custom_call.1} parent=1 // pred_region
      %36 = dma.done [#allocation4], 256
    $region13: #{tpu_custom_call.1} parent=1 // pred_fallthru
      _
    // Predicated region
    $region14: #{tpu_custom_call.1} parent=1 // pred_check
      _
    $region15: #{tpu_custom_call.1} parent=1 // pred_check_branch
      %38 = sbr.rel (0) target = $region17
    $region16: #{tpu_custom_call.1} parent=1 // pred_region
      %39 = dma.done [#allocation7], 512
    $region17: #{tpu_custom_call.1} parent=1 // pred_fallthru
      _
    %p40 = scmp.eq.s32.totalorder 0, 0
    // Predicated region
    $region18: #{tpu_custom_call.1} parent=1 // pred_check
      %p41 = pneg %p40
    $region19: #{tpu_custom_call.1} parent=1 // pred_check_branch
      %43 = sbr.rel (%p41) target = $region21
    $region20: #{tpu_custom_call.1} parent=1 // pred_region
      %vm44 = vcmask 261120
      %45 = vst.msk [vmem:[#allocation2] sm:$0xff] %vm44, 0.0
      %46 = vst.msk [vmem:[#allocation2 + $0x8] sm:$0xff] %vm44, 0.0
    $region21: #{tpu_custom_call.1} parent=1 // pred_fallthru
      _
    %v47 = vld [vmem:[#allocation2] sm:$0xff]
    %v48 = vld [vmem:[#allocation2 + $0x8] sm:$0xff]
    %v49 = vld [vmem:[#allocation3] sm:$0xff]
    %v50 = vld [vmem:[#allocation3 + $0x8] sm:$0xff]
    %v51 = vld [vmem:[#allocation6] sm:$0xff]
    %v52 = vld [vmem:[#allocation6 + $0x8] sm:$0xff]
    %v53 = vld [vmem:[#allocation6 + $0x10] sm:$0xff]
    %v54 = vld [vmem:[#allocation6 + $0x18] sm:$0xff]
    %vm55 = vcmask 261120
    %v57 = vsel %vm55, %v49, 0
    %v60 = vsel %vm55, %v50, 0
    %62 = vmatprep.subr.mxu0 0.0
    %63 = vmatpush1.msra.mxu0 %v51
    %64 = vmatprep.subr.mxu0 0.0
    %65 = vmatpush1.msra.mxu0 %v52
    %66 = vmatprep.subr.mxu0 0.0
    %67 = vmatpush1.msra.mxu0 %v53
    %68 = vmatprep.subr.mxu0 0.0
    %69 = vmatpush1.msra.mxu0 %v54
    %70 = vmatprep.subr.mxu0 0.0
    %71 = vmatpush1.msra.mxu0 0.0
    %72 = vmatprep.subr.mxu0 0.0
    %73 = vmatpush1.msra.mxu0 0.0
    %74 = vmatprep.subr.mxu0 0.0
    %75 = vmatpush1.msra.mxu0 0.0
    %76 = vmatprep.subr.mxu0 0.0
    %77 = vmatpush1.msra.mxu0 0.0
    %78 = vmatprep.subr.mxu0 0.0
    %79 = vmatpush1.msra.mxu0 0.0
    %80 = vmatprep.subr.mxu0 0.0
    %81 = vmatpush1.msra.mxu0 0.0
    %82 = vmatprep.subr.mxu0 0.0
    %83 = vmatpush1.msra.mxu0 0.0
    %84 = vmatprep.subr.mxu0 0.0
    %85 = vmatpush1.msra.mxu0 0.0
    %86 = vmatprep.subr.mxu0 0.0
    %87 = vmatpush1.msra.mxu0 0.0
    %88 = vmatprep.subr.mxu0 0.0
    %89 = vmatpush1.msra.mxu0 0.0
    %90 = vmatprep.subr.mxu0 0.0
    %91 = vmatpush1.msra.mxu0 0.0
    %92 = vmatprep.subr.mxu0 0.0
    %93 = vmatpush1.msra.mxu0 0.0
    %94 = vmatprep.subr.mxu0 0.0
    %95 = vmatpush1.msra.mxu0 0.0
    %96 = vmatprep.subr.mxu0 0.0
    %97 = vmatpush1.msra.mxu0 0.0
    %98 = vmatprep.subr.mxu0 0.0
    %99 = vmatpush1.msra.mxu0 0.0
    %100 = vmatprep.subr.mxu0 0.0
    %101 = vmatpush1.msra.mxu0 0.0
    %102 = vmatprep.subr.mxu0 0.0
    %103 = vmatpush1.msra.mxu0 0.0
    %104 = vmatprep.subr.mxu0 0.0
    %105 = vmatpush1.msra.mxu0 0.0
    %106 = vmatprep.subr.mxu0 0.0
    %107 = vmatpush1.msra.mxu0 0.0
    %108 = vmatprep.subr.mxu0 0.0
    %109 = vmatpush1.msra.mxu0 0.0
    %110 = vmatprep.subr.mxu0 0.0
    %111 = vmatpush1.msra.mxu0 0.0
    %112 = vmatprep.subr.mxu0 0.0
    %113 = vmatpush1.msra.mxu0 0.0
    %114 = vmatprep.subr.mxu0 0.0
    %115 = vmatpush1.msra.mxu0 0.0
    %116 = vmatprep.subr.mxu0 0.0
    %117 = vmatpush1.msra.mxu0 0.0
    %118 = vmatprep.subr.mxu0 0.0
    %119 = vmatpush1.msra.mxu0 0.0
    %120 = vmatprep.subr.mxu0 0.0
    %121 = vmatpush1.msra.mxu0 0.0
    %122 = vmatprep.subr.mxu0 0.0
    %123 = vmatpush1.msra.mxu0 0.0
    %124 = vmatprep.subr.mxu0 0.0
    %125 = vmatpush1.msra.mxu0 0.0
    %126 = vmatprep.mubr.f32.mxu0 0.0
    %127 = vmatmul.mubr.f32.gmra.mrb[0].mxu0 %v57
    %v128 = vpop.f32.mrb[0].mxu0
    %v129 = vadd.f32 0.0, %v128
    %v130 = vpop.f32.mrb[0].mxu0
    %131 = vmatprep.mubr.f32.mxu0 0.0
    %132 = vmatmul.mubr.f32.gmra.mrb[0].mxu0 %v60
    %v133 = vpop.f32.mrb[0].mxu0
    %v134 = vadd.f32 0.0, %v133
    %v135 = vpop.f32.mrb[0].mxu0
    %136 = vdwg.mxu0
    %v137 = vadd.f32 %v47, %v129
    %v138 = vadd.f32 %v48, %v134
    %139 = vst.msk [vmem:[#allocation2] sm:$0xff] %vm55, %v137
    %140 = vst.msk [vmem:[#allocation2 + $0x8] sm:$0xff] %vm55, %v138
    // Predicated region
    $region22: #{tpu_custom_call.1} parent=1 // pred_check
      %p141 = pneg %p40
    $region23: #{tpu_custom_call.1} parent=1 // pred_check_branch
      %143 = sbr.rel (%p141) target = $region25
    $region24: #{tpu_custom_call.1} parent=1 // pred_region
      %v144 = vld [vmem:[#allocation2] sm:$0xff]
      %v145 = vld [vmem:[#allocation2 + $0x8] sm:$0xff]
      %146 = vst.msk [vmem:[#allocation8] sm:$0xff] %vm55, %v144
      %147 = vst.msk [vmem:[#allocation8 + $0x8] sm:$0xff] %vm55, %v145
    $region25: #{tpu_custom_call.1} parent=1 // pred_fallthru
      _
    // Predicated region
    $region26: #{tpu_custom_call.1} parent=1 // pred_check
      _
    $region27: #{tpu_custom_call.1} parent=1 // pred_check_branch
      %149 = sbr.rel (0) target = $region29
    $region28: #{tpu_custom_call.1} parent=1 // pred_region
      %s151 = ssub.s32 256, 256
      %152 = vsyncadd [#allocation5], %s151
      %s153 = sshll.u32 [#allocation8], 4
      %s154 = int_to_ptr.vmem [resolvable:$true] %s153
      %159 = dma.vmem_to_hbm [thread:$0]  %s154, 256, %s2, [#allocation5], 128, 128, 8
    $region29: #{tpu_custom_call.1} parent=1 // pred_fallthru
      _
    // Predicated region
    $region30: #{tpu_custom_call.1} parent=1 // pred_check
      _
    $region31: #{tpu_custom_call.1} parent=1 // pred_check_branch
      %161 = sbr.rel (0) target = $region33
    $region32: #{tpu_custom_call.1} parent=1 // pred_region
      %162 = dma.done [#allocation5], 256
    $region33: #{tpu_custom_call.1} parent=1 // pred_fallthru
      _
    %163 = vsyncpa [#allocation4], 1
    %164 = vsyncpa [#allocation7], 1
    %165 = vsyncpa [#allocation5], 1

</llo_original>
